<compile_context>
chip_gen: v6e
topology: v6e:2x2x1
jax: 0.10.0
libtpu: 0.0.40
codegen_flags: <defaults>
</compile_context>

<pallas_src>
import functools

import jax
import jax.numpy as jnp
from jax import lax
from jax.experimental import pallas as pl
from jax.experimental.pallas import tpu as pltpu

LN_EPS = 1e-5   # used only by the pure-JAX reference formula


# ---------------------------------------------------------------------------
# The fused kernel: one batch element per grid step, NCL layout ((C, L) slab).
# ---------------------------------------------------------------------------
def _bytenet_kernel(x_ref, w_in_ref, b_in_ref, w_eo_ref, b_eo_ref,
                    w_h1_ref, b_h1_ref, w_h2_ref, b_h2_ref, o_ref):
    x = x_ref[...]                                            # (128, L) bf16

    def mm(w_ref, a):                                         # bf16 MXU matmul, f32 acc
        return jnp.dot(w_ref[...], a, preferred_element_type=jnp.float32)

    # Encoder input conv (128 -> 2d); the summed encoder residual-block deltas
    # are pre-folded into b_in (see wrapper).
    z = mm(w_in_ref, x) + b_in_ref[...]                       # (2d, L) f32
    # encoder_out_conv (2d -> 2d); decoder residual-block deltas folded into b_eo.
    z = mm(w_eo_ref, z.astype(jnp.bfloat16)) + b_eo_ref[...]  # (2d, L) f32
    # Decoder head: conv1x1 -> ReLU -> conv1x1.
    h = jnp.maximum(mm(w_h1_ref, z.astype(jnp.bfloat16)) + b_h1_ref[...], 0.0)
    s = mm(w_h2_ref, h.astype(jnp.bfloat16)) + b_h2_ref[...]  # (out_ch, L) f32
    # LogSoftmax over PyTorch dim=-1 (the sequence axis == lanes).
    m = jnp.max(s, axis=-1, keepdims=True)
    lse = jnp.log(jnp.sum(jnp.exp(s - m), axis=-1, keepdims=True))
    o_ref[...] = s - m - lse


# ---------------------------------------------------------------------------
# Model glue: parameter setup, host-side folding, pallas_call
# ---------------------------------------------------------------------------
def dilation_schedule(num_sets, set_size, max_dilation):
    dils = []
    for _ in range(num_sets):
        rate = 1
        for _ in range(set_size):
            rate *= 2
            dils.append(rate if rate <= max_dilation else max_dilation)
    return tuple(dils)


def init_params(key, cfg):
    d = cfg["hidden_channels"]
    c2 = 2 * d
    k = cfg["masked_kernel_size"]
    out_ch = cfg["output_channels"]
    nblocks = cfg["num_sets"] * cfg["set_size"]

    keys = list(jax.random.split(key, 128))
    it = iter(keys)

    def nrm(shape, scale=0.05):
        return scale * jax.random.normal(next(it), shape, dtype=jnp.float32)

    def make_block():
        # ln rows = (ln1, ln2, ln3); cols = (weight, bias) of nn.LayerNorm(1)
        ln = jnp.array([[1.0, 0.0]] * 3, jnp.float32) + nrm((3, 2), 0.1)
        return (
            ln,
            nrm((c2, d)),      # conv1 weight, stored (Cin, Cout) == torch W[:, :, 0].T
            nrm((d,)),         # conv1 bias
            nrm((k, d, d)),    # conv2 weight, stored (tap, Cin, Cout)
            nrm((d,)),         # conv2 bias
            nrm((d, c2)),      # conv3 weight (Cin, Cout)
            nrm((c2,)),        # conv3 bias
        )

    encoder = dict(
        in_w=nrm((128, c2)), in_b=nrm((c2,)),
        blocks=[make_block() for _ in range(nblocks)],
        out_w=nrm((c2, c2)), out_b=nrm((c2,)),
    )
    decoder = dict(
        blocks=[make_block() for _ in range(nblocks)],
        h1_w=nrm((c2, d)), h1_b=nrm((d,)),
        h2_w=nrm((d, out_ch)), h2_b=nrm((out_ch,)),
    )
    return dict(encoder=encoder, decoder=decoder)


def _stack_delta(blocks):
    """sum_b [ ReLU(ln3_bias_b) * column_sum(conv3_W_b) + conv3_bias_b ]  ->  (2d,)

    Exact contribution of one residual-block stack: LayerNorm(1) outputs its
    bias everywhere, so conv3 sees a constant input and the whole block adds a
    position-independent row vector to the residual stream.
    """
    deltas = [jnp.maximum(p[0][2, 1], 0.0) * jnp.sum(p[5], axis=0) + p[6]
              for p in blocks]
    return jnp.sum(jnp.stack(deltas), axis=0)


def encoder_decoder_forward(x_ncl, params, cfg):
    d = cfg["hidden_channels"]
    c2 = 2 * d
    out_ch = cfg["output_channels"]
    n, c_in, l = x_ncl.shape
    enc, dec = params["encoder"], params["decoder"]

    # ---- host-side folding of the mathematically dead block compute (tiny XLA ops)
    b_in_eff = (enc["in_b"] + _stack_delta(enc["blocks"])).reshape(c2, 1).astype(jnp.float32)
    b_eo_eff = (enc["out_b"] + _stack_delta(dec["blocks"])).reshape(c2, 1).astype(jnp.float32)

    # Weights to (Cout, Cin) bf16 so the kernel does W @ x on the (C, L) slab.
    w_in = enc["in_w"].T.astype(jnp.bfloat16)                 # (2d, 128)
    w_eo = enc["out_w"].T.astype(jnp.bfloat16)                # (2d, 2d)
    w_h1 = dec["h1_w"].T.astype(jnp.bfloat16)                 # (d, 2d)
    w_h2 = dec["h2_w"].T.astype(jnp.bfloat16)                 # (out_ch, d)
    b_h1 = dec["h1_b"].reshape(d, 1).astype(jnp.float32)
    b_h2 = dec["h2_b"].reshape(out_ch, 1).astype(jnp.float32)

    x = x_ncl.astype(jnp.bfloat16)                            # keep NCL; no transposes

    def full2d(shape):
        return pl.BlockSpec(shape, lambda b: (0, 0))          # weight: resident, block 0

    in_specs = [
        pl.BlockSpec((None, c_in, l), lambda b: (b, 0, 0)),   # per-batch (C, L) slab
        full2d((c2, c_in)), full2d((c2, 1)),
        full2d((c2, c2)),   full2d((c2, 1)),
        full2d((d, c2)),    full2d((d, 1)),
        full2d((out_ch, d)), full2d((out_ch, 1)),
    ]
    out_specs = pl.BlockSpec((None, out_ch, l), lambda b: (b, 0, 0))

    flops = 2 * n * l * (c_in * c2 + c2 * c2 + c2 * d + d * out_ch)
    bytes_accessed = (n * c_in * l * 2 + n * out_ch * l * 4
                      + 2 * (c2 * c_in + c2 * c2 + d * c2 + out_ch * d)
                      + 4 * (2 * c2 + d + out_ch))
    cost = pl.CostEstimate(flops=flops,
                           transcendentals=n * out_ch * l,
                           bytes_accessed=bytes_accessed)

    out = pl.pallas_call(
        _bytenet_kernel,
        out_shape=jax.ShapeDtypeStruct((n, out_ch, l), jnp.float32),
        grid=(n,),
        in_specs=in_specs,
        out_specs=out_specs,
        compiler_params=pltpu.CompilerParams(
            dimension_semantics=("parallel",),
            # Footprint per step is ~KBs here; re-derive for production L
            # (v7x physical VMEM is 64 MiB vs 128 MiB on v5e/v6e).
            vmem_limit_bytes=32 * 1024 * 1024),
        cost_estimate=cost,
    )(x, w_in, b_in_eff, w_eo, b_eo_eff, w_h1, b_h1, w_h2, b_h2)
    return out                                                # (N, out_ch, L) — PyTorch NCL


# ---------------------------------------------------------------------------
# Pure-JAX f32 reference (full explicit per-block compute), correctness check
# ---------------------------------------------------------------------------
def ref_forward(x_ncl, params, cfg):
    k = cfg["masked_kernel_size"]
    dils = dilation_schedule(cfg["num_sets"], cfg["set_size"],
                             cfg["max_dilation_rate"])

    def pconv(x, w, b):
        return jnp.einsum("nlc,cd->nld", x, w) + b

    def ln1(v, w, b):
        # nn.LayerNorm(1): singleton normalization group -> output == bias.
        return (v - v) * lax.rsqrt(jnp.zeros_like(v) + LN_EPS) * w + b

    def block(x, p, dil, decoder):
        ln, w1, b1, w2, b2, w3, b3 = p
        n, l, _ = x.shape
        d = w1.shape[1]
        h = jnp.maximum(ln1(x, ln[0, 0], ln[0, 1]), 0.0)
        h = pconv(h, w1, b1)
        h = jnp.maximum(ln1(h, ln[1, 0], ln[1, 1]), 0.0)
        anchor = (k - 1) if decoder else (k - 1) // 2
        pad_l, pad_r = anchor * dil, (k - 1 - anchor) * dil
        hp = jnp.pad(h, ((0, 0), (pad_l, pad_r), (0, 0)))
        conv = jnp.zeros((n, l, d), jnp.float32)
        for t in range(k):
            conv = conv + jnp.einsum("nlc,cd->nld",
                                     hp[:, t * dil:t * dil + l, :], w2[t])
        h = conv + b2
        h = jnp.maximum(ln1(h, ln[2, 0], ln[2, 1]), 0.0)
        h = pconv(h, w3, b3)
        return x + h

    x = jnp.transpose(x_ncl.astype(jnp.float32), (0, 2, 1))
    enc, dec = params["encoder"], params["decoder"]
    x = pconv(x, enc["in_w"], enc["in_b"])
    for p, dil in zip(enc["blocks"], dils):
        x = block(x, p, dil, False)
    x = pconv(x, enc["out_w"], enc["out_b"])
    for p, dil in zip(dec["blocks"], dils):
        x = block(x, p, dil, True)
    x = jnp.maximum(pconv(x, dec["h1_w"], dec["h1_b"]), 0.0)
    x = pconv(x, dec["h2_w"], dec["h2_b"])
    x = jax.nn.log_softmax(x, axis=1)          # PyTorch dim=-1 of NCL == sequence axis
    return jnp.transpose(x, (0, 2, 1))


if __name__ == "__main__":
    cfg = dict(kernel_size=3, max_dilation_rate=4, masked_kernel_size=3,
               num_sets=2, set_size=2, hidden_channels=32, output_channels=16)
    N, L = 2, 24

    root = jax.random.PRNGKey(0)
    k_x, k_p = jax.random.split(root)
    x = jax.random.normal(k_x, (N, 128, L), dtype=jnp.float32)   # PyTorch NCL input
    params = init_params(k_p, cfg)

    fwd = jax.jit(functools.partial(encoder_decoder_forward, cfg=cfg))
    out = jax.block_until_ready(fwd(x, params))
    assert out.shape == (N, cfg["output_channels"], L), out.shape

    ref = ref_forward(x, params, cfg)
    err = float(jnp.max(jnp.abs(out - ref)))
    # Only the four live 1x1 convs run with bf16 operands (f32 accumulation);
    # tolerance tightened vs. the previous 5e-2 now that dead compute is gone.
    assert err < 2e-2, f"max abs error vs JAX reference: {err}"

    print("KERNEL_OK")
</pallas_src>

<mosaic_0001>
module attributes {stable_mosaic.version = 11 : i64} {
  func.func @_bytenet_kernel(%arg0: i32, %arg1: memref<1x128x24xbf16, #tpu.memory_space<vmem>>, %arg2: memref<64x128xbf16, #tpu.memory_space<vmem>>, %arg3: memref<64x1xf32, #tpu.memory_space<vmem>>, %arg4: memref<64x64xbf16, #tpu.memory_space<vmem>>, %arg5: memref<64x1xf32, #tpu.memory_space<vmem>>, %arg6: memref<32x64xbf16, #tpu.memory_space<vmem>>, %arg7: memref<32x1xf32, #tpu.memory_space<vmem>>, %arg8: memref<16x32xbf16, #tpu.memory_space<vmem>>, %arg9: memref<16x1xf32, #tpu.memory_space<vmem>>, %arg10: memref<1x16x24xf32, #tpu.memory_space<vmem>>) attributes {dimension_semantics = [#tpu.dimension_semantics<parallel>], iteration_bounds = array<i64: 2>, scalar_prefetch = 0 : i64, scratch_operands = 0 : i64, tpu.core_type = #tpu.core_type<tc>, window_params = [{transform_indices = @transform_0, window_bounds = array<i64: 1, 128, 24>}, {pipeline_mode = #tpu.pipeline_mode<synchronous>, transform_indices = @transform_1, window_bounds = array<i64: 64, 128>}, {pipeline_mode = #tpu.pipeline_mode<synchronous>, transform_indices = @transform_2, window_bounds = array<i64: 64, 1>}, {pipeline_mode = #tpu.pipeline_mode<synchronous>, transform_indices = @transform_3, window_bounds = array<i64: 64, 64>}, {pipeline_mode = #tpu.pipeline_mode<synchronous>, transform_indices = @transform_4, window_bounds = array<i64: 64, 1>}, {pipeline_mode = #tpu.pipeline_mode<synchronous>, transform_indices = @transform_5, window_bounds = array<i64: 32, 64>}, {pipeline_mode = #tpu.pipeline_mode<synchronous>, transform_indices = @transform_6, window_bounds = array<i64: 32, 1>}, {pipeline_mode = #tpu.pipeline_mode<synchronous>, transform_indices = @transform_7, window_bounds = array<i64: 16, 32>}, {pipeline_mode = #tpu.pipeline_mode<synchronous>, transform_indices = @transform_8, window_bounds = array<i64: 16, 1>}, {transform_indices = @transform_9, window_bounds = array<i64: 1, 16, 24>}]} {
    %c0 = arith.constant 0 : index
    %c0_0 = arith.constant 0 : index
    %c0_1 = arith.constant 0 : index
    %0 = vector.load %arg1[%c0, %c0_0, %c0_1] : memref<1x128x24xbf16, #tpu.memory_space<vmem>>, vector<1x128x24xbf16>
    %1 = vector.shape_cast %0 : vector<1x128x24xbf16> to vector<128x24xbf16>
    %c0_2 = arith.constant 0 : index
    %c0_3 = arith.constant 0 : index
    %2 = vector.load %arg2[%c0_2, %c0_3] : memref<64x128xbf16, #tpu.memory_space<vmem>>, vector<64x128xbf16>
    %cst = arith.constant dense<0.000000e+00> : vector<64x24xf32>
    %3 = tpu.matmul %2, %1, %cst {dimension_numbers = #tpu.dot_dimension_numbers<[1], [0], [0], [1], [0, 0, 1, 1], [], []>} : vector<64x128xbf16>, vector<128x24xbf16>, vector<64x24xf32> -> vector<64x24xf32>
    %c0_4 = arith.constant 0 : index
    %c0_5 = arith.constant 0 : index
    %4 = vector.load %arg3[%c0_4, %c0_5] : memref<64x1xf32, #tpu.memory_space<vmem>>, vector<64x1xf32>
    %5 = vector.broadcast %4 : vector<64x1xf32> to vector<64x24xf32>
    %6 = arith.addf %3, %5 : vector<64x24xf32>
    %7 = arith.truncf %6 : vector<64x24xf32> to vector<64x24xbf16>
    %c0_6 = arith.constant 0 : index
    %c0_7 = arith.constant 0 : index
    %8 = vector.load %arg4[%c0_6, %c0_7] : memref<64x64xbf16, #tpu.memory_space<vmem>>, vector<64x64xbf16>
    %cst_8 = arith.constant dense<0.000000e+00> : vector<64x24xf32>
    %9 = tpu.matmul %8, %7, %cst_8 {dimension_numbers = #tpu.dot_dimension_numbers<[1], [0], [0], [1], [0, 0, 1, 1], [], []>} : vector<64x64xbf16>, vector<64x24xbf16>, vector<64x24xf32> -> vector<64x24xf32>
    %c0_9 = arith.constant 0 : index
    %c0_10 = arith.constant 0 : index
    %10 = vector.load %arg5[%c0_9, %c0_10] : memref<64x1xf32, #tpu.memory_space<vmem>>, vector<64x1xf32>
    %11 = vector.broadcast %10 : vector<64x1xf32> to vector<64x24xf32>
    %12 = arith.addf %9, %11 : vector<64x24xf32>
    %13 = arith.truncf %12 : vector<64x24xf32> to vector<64x24xbf16>
    %c0_11 = arith.constant 0 : index
    %c0_12 = arith.constant 0 : index
    %14 = vector.load %arg6[%c0_11, %c0_12] : memref<32x64xbf16, #tpu.memory_space<vmem>>, vector<32x64xbf16>
    %cst_13 = arith.constant dense<0.000000e+00> : vector<32x24xf32>
    %15 = tpu.matmul %14, %13, %cst_13 {dimension_numbers = #tpu.dot_dimension_numbers<[1], [0], [0], [1], [0, 0, 1, 1], [], []>} : vector<32x64xbf16>, vector<64x24xbf16>, vector<32x24xf32> -> vector<32x24xf32>
    %c0_14 = arith.constant 0 : index
    %c0_15 = arith.constant 0 : index
    %16 = vector.load %arg7[%c0_14, %c0_15] : memref<32x1xf32, #tpu.memory_space<vmem>>, vector<32x1xf32>
    %17 = vector.broadcast %16 : vector<32x1xf32> to vector<32x24xf32>
    %18 = arith.addf %15, %17 : vector<32x24xf32>
    %cst_16 = arith.constant 0.000000e+00 : f32
    %19 = vector.broadcast %cst_16 : f32 to vector<32x24xf32>
    %20 = arith.maximumf %18, %19 : vector<32x24xf32>
    %21 = arith.truncf %20 : vector<32x24xf32> to vector<32x24xbf16>
    %c0_17 = arith.constant 0 : index
    %c0_18 = arith.constant 0 : index
    %22 = vector.load %arg8[%c0_17, %c0_18] : memref<16x32xbf16, #tpu.memory_space<vmem>>, vector<16x32xbf16>
    %cst_19 = arith.constant dense<0.000000e+00> : vector<16x24xf32>
    %23 = tpu.matmul %22, %21, %cst_19 {dimension_numbers = #tpu.dot_dimension_numbers<[1], [0], [0], [1], [0, 0, 1, 1], [], []>} : vector<16x32xbf16>, vector<32x24xbf16>, vector<16x24xf32> -> vector<16x24xf32>
    %c0_20 = arith.constant 0 : index
    %c0_21 = arith.constant 0 : index
    %24 = vector.load %arg9[%c0_20, %c0_21] : memref<16x1xf32, #tpu.memory_space<vmem>>, vector<16x1xf32>
    %25 = vector.broadcast %24 : vector<16x1xf32> to vector<16x24xf32>
    %26 = arith.addf %23, %25 : vector<16x24xf32>
    %cst_22 = arith.constant dense<0xFF800000> : vector<16xf32>
    %27 = vector.multi_reduction <maximumf>, %26, %cst_22 [1] : vector<16x24xf32> to vector<16xf32>
    %28 = vector.shape_cast %27 : vector<16xf32> to vector<16x1xf32>
    %29 = vector.broadcast %28 : vector<16x1xf32> to vector<16x24xf32>
    %30 = arith.subf %26, %29 : vector<16x24xf32>
    %31 = math.exp %30 : vector<16x24xf32>
    %cst_23 = arith.constant dense<0.000000e+00> : vector<16xf32>
    %32 = vector.multi_reduction <add>, %31, %cst_23 [1] : vector<16x24xf32> to vector<16xf32>
    %33 = vector.shape_cast %32 : vector<16xf32> to vector<16x1xf32>
    %34 = math.log %33 : vector<16x1xf32>
    %35 = vector.broadcast %28 : vector<16x1xf32> to vector<16x24xf32>
    %36 = arith.subf %26, %35 : vector<16x24xf32>
    %37 = vector.broadcast %34 : vector<16x1xf32> to vector<16x24xf32>
    %38 = arith.subf %36, %37 : vector<16x24xf32>
    %c0_24 = arith.constant 0 : index
    %c0_25 = arith.constant 0 : index
    %c0_26 = arith.constant 0 : index
    %39 = vector.load %arg10[%c0_24, %c0_25, %c0_26] : memref<1x16x24xf32, #tpu.memory_space<vmem>>, vector<1x16x24xf32>
    %40 = vector.shape_cast %39 : vector<1x16x24xf32> to vector<16x24xf32>
    %41 = vector.shape_cast %38 : vector<16x24xf32> to vector<1x16x24xf32>
    tpu.vector_store %arg10[%c0_24, %c0_25, %c0_26], %41 {strides = array<i32>} : memref<1x16x24xf32, #tpu.memory_space<vmem>>, vector<1x16x24xf32>,
    return
  }
  func.func @transform_0(%arg0: i32) -> (i32, i32, i32) {
    %c0_i32 = arith.constant 0 : i32
    %c0_i32_0 = arith.constant 0 : i32
    %c0_i32_1 = arith.constant 0 : i32
    return %arg0, %c0_i32, %c0_i32_0 : i32, i32, i32
  }
  func.func @transform_1(%arg0: i32) -> (i32, i32) {
    %c0_i32 = arith.constant 0 : i32
    %c0_i32_0 = arith.constant 0 : i32
    %c0_i32_1 = arith.constant 0 : i32
    return %c0_i32, %c0_i32_0 : i32, i32
  }
  func.func @transform_2(%arg0: i32) -> (i32, i32) {
    %c0_i32 = arith.constant 0 : i32
    %c0_i32_0 = arith.constant 0 : i32
    %c0_i32_1 = arith.constant 0 : i32
    return %c0_i32, %c0_i32_0 : i32, i32
  }
  func.func @transform_3(%arg0: i32) -> (i32, i32) {
    %c0_i32 = arith.constant 0 : i32
    %c0_i32_0 = arith.constant 0 : i32
    %c0_i32_1 = arith.constant 0 : i32
    return %c0_i32, %c0_i32_0 : i32, i32
  }
  func.func @transform_4(%arg0: i32) -> (i32, i32) {
    %c0_i32 = arith.constant 0 : i32
    %c0_i32_0 = arith.constant 0 : i32
    %c0_i32_1 = arith.constant 0 : i32
    return %c0_i32, %c0_i32_0 : i32, i32
  }
  func.func @transform_5(%arg0: i32) -> (i32, i32) {
    %c0_i32 = arith.constant 0 : i32
    %c0_i32_0 = arith.constant 0 : i32
    %c0_i32_1 = arith.constant 0 : i32
    return %c0_i32, %c0_i32_0 : i32, i32
  }
  func.func @transform_6(%arg0: i32) -> (i32, i32) {
    %c0_i32 = arith.constant 0 : i32
    %c0_i32_0 = arith.constant 0 : i32
    %c0_i32_1 = arith.constant 0 : i32
    return %c0_i32, %c0_i32_0 : i32, i32
  }
  func.func @transform_7(%arg0: i32) -> (i32, i32) {
    %c0_i32 = arith.constant 0 : i32
    %c0_i32_0 = arith.constant 0 : i32
    %c0_i32_1 = arith.constant 0 : i32
    return %c0_i32, %c0_i32_0 : i32, i32
  }
  func.func @transform_8(%arg0: i32) -> (i32, i32) {
    %c0_i32 = arith.constant 0 : i32
    %c0_i32_0 = arith.constant 0 : i32
    %c0_i32_1 = arith.constant 0 : i32
    return %c0_i32, %c0_i32_0 : i32, i32
  }
  func.func @transform_9(%arg0: i32) -> (i32, i32, i32) {
    %c0_i32 = arith.constant 0 : i32
    %c0_i32_0 = arith.constant 0 : i32
    %c0_i32_1 = arith.constant 0 : i32
    return %arg0, %c0_i32, %c0_i32_0 : i32, i32, i32
  }
}

</mosaic_0001>

<llo_original>
// kernel: encoder_decoder_forward.1
$region0: #{encoder_decoder_forward.1}
  #allocation0 [shape = 'u32[]', space=smem, size = 0x4, offset = 0x4, fixed_abs, tag = 'smem constant byte address 0x4 - core index']
  #allocation1 [shape = 'u32[144,128]{1,0:T(1,128)}', space=vmem, size = 0x12000, scoped, tag = 'internal scratch']
  %s0 = inlined_call_operand.vmem [shape: bf16[2,128,24], index: 0, kind: input, shape index: {}]
  %s1 = inlined_call_operand.vmem [shape: bf16[64,128], index: 1, kind: input, shape index: {}]
  %s2 = inlined_call_operand.vmem [shape: f32[64,1], index: 2, kind: input, shape index: {}]
  %s3 = inlined_call_operand.vmem [shape: bf16[64,64], index: 3, kind: input, shape index: {}]
  %s4 = inlined_call_operand.vmem [shape: f32[64,1], index: 4, kind: input, shape index: {}]
  %s5 = inlined_call_operand.vmem [shape: bf16[32,64], index: 5, kind: input, shape index: {}]
  %s6 = inlined_call_operand.vmem [shape: f32[32,1], index: 6, kind: input, shape index: {}]
  %s7 = inlined_call_operand.vmem [shape: bf16[16,32], index: 7, kind: input, shape index: {}]
  %s8 = inlined_call_operand.vmem [shape: f32[16,1], index: 8, kind: input, shape index: {}]
  %s9 = inlined_call_operand.hbm [shape: f32[2,16,24], index: 9, kind: output, shape index: {}]
  %s10 = sld [smem:[#allocation0]]
  $region69: #{encoder_decoder_forward.1} parent=0
    _
  %s12 = ssub.s32 1, %s10
  %s13 = scalar_select 0, %s12, %s10
  $region1: #{encoder_decoder_forward.1} parent=0
    #allocation2 [shape = 'u8[16384]{0}', space=vmem, size = 0x4000, scoped, tag = 'output window, operand 0']
    #allocation3 [shape = 's32[2]{0}', space=sflag, size = 0x8, scoped, tag = 'scoped memory for encoder_decoder_forward.1']
    %14 = vsyncpa [#allocation3], 0
    %s15 = scalar_lea.sflag [#allocation3], 1
    %16 = vsyncpa %s15, 0
    loop: start=0, step=1, limit=4
    $region2: #{encoder_decoder_forward.1} parent=1 // loop_pre_header
      _
    $region3: #{encoder_decoder_forward.1} parent=1 // loop_header
      %s18 = sphi 0, %s22
      %p19 = scmp.ge.s32.totalorder %s18, 4
      %s28 = sphi 0, %s30
      %s31 = sphi 0, %s28
      %s32 = sphi 0, %s31
      %s48 = sphi 0, %s32
      %s52 = sphi 0, %s52
      %s54 = sphi 0, %s52
      %s55 = sphi 0, %s54
      %s69 = sphi 0, %s55
      %s73 = sphi 0, %s73
      %s75 = sphi 0, %s73
      %s76 = sphi 0, %s75
      %s90 = sphi 0, %s76
      %s94 = sphi 0, %s94
      %s96 = sphi 0, %s94
      %s97 = sphi 0, %s96
      %s111 = sphi 0, %s97
      %s115 = sphi 0, %s115
      %s117 = sphi 0, %s115
      %s118 = sphi 0, %s117
      %s132 = sphi 0, %s118
      %s136 = sphi 0, %s136
      %s138 = sphi 0, %s136
      %s139 = sphi 0, %s138
      %s153 = sphi 0, %s139
      %s157 = sphi 0, %s157
      %s159 = sphi 0, %s157
      %s160 = sphi 0, %s159
      %s174 = sphi 0, %s160
      %s178 = sphi 0, %s178
      %s180 = sphi 0, %s178
      %s181 = sphi 0, %s180
      %s195 = sphi 0, %s181
      %s199 = sphi 0, %s199
      %s201 = sphi 0, %s199
      %s202 = sphi 0, %s201
      %s216 = sphi 0, %s202
      %s222 = sphi 0, %s224
      %s225 = sphi 0, %s222
      %s226 = sphi 0, %s225
      %s242 = sphi 0, %s226
    $region4: #{encoder_decoder_forward.1} parent=1 // loop_header_branch
      %21 = sbr.rel (%p19) target = $region8
    $region5: #{encoder_decoder_forward.1} parent=1 // loop_body
      %s23 = ssub.s32 %s18, 1
      %s24 = ssub.s32 %s18, 2
      %s25 = sadd.s32 %s18, 1
      %s26 = ssub.s32 %s18, %s25
      %p27 = scmp.eq.s32.totalorder %s26, 0
      %s29 = sadd.s32 %s28, 1
      %s30 = scalar_select %p27, %s28, %s29
      %p33 = pneg %p27
      %p34 = scmp.eq.s32.totalorder %s18, 1
      %p35 = por %p33, %p34
      %p36 = scmp.ne.s32.totalorder %s28, %s31
      %p37 = scmp.eq.s32.totalorder %s18, 0
      %p38 = por %p36, %p37
      %p39 = scmp.ne.s32.totalorder %s28, %s31
      %p40 = scmp.eq.s32.totalorder %s23, 1
      %p41 = por %p39, %p40
      %p42 = scmp.ne.s32.totalorder %s31, %s32
      %p43 = scmp.eq.s32.totalorder %s23, 0
      %p44 = por %p42, %p43
      %p45 = scmp.ne.s32.totalorder %s31, %s32
      %p46 = scmp.eq.s32.totalorder %s24, 1
      %p47 = por %p45, %p46
      %p49 = scmp.ne.s32.totalorder %s32, %s48
      %p50 = scmp.eq.s32.totalorder %s24, 0
      %p51 = por %p49, %p50
      %s53 = sadd.s32 %s52, 1
      %p56 = scmp.eq.s32.totalorder %s18, 1
      %p57 = scmp.ne.s32.totalorder %s52, %s54
      %p58 = scmp.eq.s32.totalorder %s18, 0
      %p59 = por %p57, %p58
      %p60 = scmp.ne.s32.totalorder %s52, %s54
      %p61 = scmp.eq.s32.totalorder %s23, 1
      %p62 = por %p60, %p61
      %p63 = scmp.ne.s32.totalorder %s54, %s55
      %p64 = scmp.eq.s32.totalorder %s23, 0
      %p65 = por %p63, %p64
      %p66 = scmp.ne.s32.totalorder %s54, %s55
      %p67 = scmp.eq.s32.totalorder %s24, 1
      %p68 = por %p66, %p67
      %p70 = scmp.ne.s32.totalorder %s55, %s69
      %p71 = scmp.eq.s32.totalorder %s24, 0
      %p72 = por %p70, %p71
      %s74 = sadd.s32 %s73, 1
      %p77 = scmp.eq.s32.totalorder %s18, 1
      %p78 = scmp.ne.s32.totalorder %s73, %s75
      %p79 = scmp.eq.s32.totalorder %s18, 0
      %p80 = por %p78, %p79
      %p81 = scmp.ne.s32.totalorder %s73, %s75
      %p82 = scmp.eq.s32.totalorder %s23, 1
      %p83 = por %p81, %p82
      %p84 = scmp.ne.s32.totalorder %s75, %s76
      %p85 = scmp.eq.s32.totalorder %s23, 0
      %p86 = por %p84, %p85
      %p87 = scmp.ne.s32.totalorder %s75, %s76
      %p88 = scmp.eq.s32.totalorder %s24, 1
      %p89 = por %p87, %p88
      %p91 = scmp.ne.s32.totalorder %s76, %s90
      %p92 = scmp.eq.s32.totalorder %s24, 0
      %p93 = por %p91, %p92
      %s95 = sadd.s32 %s94, 1
      %p98 = scmp.eq.s32.totalorder %s18, 1
      %p99 = scmp.ne.s32.totalorder %s94, %s96
      %p100 = scmp.eq.s32.totalorder %s18, 0
      %p101 = por %p99, %p100
      %p102 = scmp.ne.s32.totalorder %s94, %s96
      %p103 = scmp.eq.s32.totalorder %s23, 1
      %p104 = por %p102, %p103
      %p105 = scmp.ne.s32.totalorder %s96, %s97
      %p106 = scmp.eq.s32.totalorder %s23, 0
      %p107 = por %p105, %p106
      %p108 = scmp.ne.s32.totalorder %s96, %s97
      %p109 = scmp.eq.s32.totalorder %s24, 1
      %p110 = por %p108, %p109
      %p112 = scmp.ne.s32.totalorder %s97, %s111
      %p113 = scmp.eq.s32.totalorder %s24, 0
      %p114 = por %p112, %p113
      %s116 = sadd.s32 %s115, 1
      %p119 = scmp.eq.s32.totalorder %s18, 1
      %p120 = scmp.ne.s32.totalorder %s115, %s117
      %p121 = scmp.eq.s32.totalorder %s18, 0
      %p122 = por %p120, %p121
      %p123 = scmp.ne.s32.totalorder %s115, %s117
      %p124 = scmp.eq.s32.totalorder %s23, 1
      %p125 = por %p123, %p124
      %p126 = scmp.ne.s32.totalorder %s117, %s118
      %p127 = scmp.eq.s32.totalorder %s23, 0
      %p128 = por %p126, %p127
      %p129 = scmp.ne.s32.totalorder %s117, %s118
      %p130 = scmp.eq.s32.totalorder %s24, 1
      %p131 = por %p129, %p130
      %p133 = scmp.ne.s32.totalorder %s118, %s132
      %p134 = scmp.eq.s32.totalorder %s24, 0
      %p135 = por %p133, %p134
      %s137 = sadd.s32 %s136, 1
      %p140 = scmp.eq.s32.totalorder %s18, 1
      %p141 = scmp.ne.s32.totalorder %s136, %s138
      %p142 = scmp.eq.s32.totalorder %s18, 0
      %p143 = por %p141, %p142
      %p144 = scmp.ne.s32.totalorder %s136, %s138
      %p145 = scmp.eq.s32.totalorder %s23, 1
      %p146 = por %p144, %p145
      %p147 = scmp.ne.s32.totalorder %s138, %s139
      %p148 = scmp.eq.s32.totalorder %s23, 0
      %p149 = por %p147, %p148
      %p150 = scmp.ne.s32.totalorder %s138, %s139
      %p151 = scmp.eq.s32.totalorder %s24, 1
      %p152 = por %p150, %p151
      %p154 = scmp.ne.s32.totalorder %s139, %s153
      %p155 = scmp.eq.s32.totalorder %s24, 0
      %p156 = por %p154, %p155
      %s158 = sadd.s32 %s157, 1
      %p161 = scmp.eq.s32.totalorder %s18, 1
      %p162 = scmp.ne.s32.totalorder %s157, %s159
      %p163 = scmp.eq.s32.totalorder %s18, 0
      %p164 = por %p162, %p163
      %p165 = scmp.ne.s32.totalorder %s157, %s159
      %p166 = scmp.eq.s32.totalorder %s23, 1
      %p167 = por %p165, %p166
      %p168 = scmp.ne.s32.totalorder %s159, %s160
      %p169 = scmp.eq.s32.totalorder %s23, 0
      %p170 = por %p168, %p169
      %p171 = scmp.ne.s32.totalorder %s159, %s160
      %p172 = scmp.eq.s32.totalorder %s24, 1
      %p173 = por %p171, %p172
      %p175 = scmp.ne.s32.totalorder %s160, %s174
      %p176 = scmp.eq.s32.totalorder %s24, 0
      %p177 = por %p175, %p176
      %s179 = sadd.s32 %s178, 1
      %p182 = scmp.eq.s32.totalorder %s18, 1
      %p183 = scmp.ne.s32.totalorder %s178, %s180
      %p184 = scmp.eq.s32.totalorder %s18, 0
      %p185 = por %p183, %p184
      %p186 = scmp.ne.s32.totalorder %s178, %s180
      %p187 = scmp.eq.s32.totalorder %s23, 1
      %p188 = por %p186, %p187
      %p189 = scmp.ne.s32.totalorder %s180, %s181
      %p190 = scmp.eq.s32.totalorder %s23, 0
      %p191 = por %p189, %p190
      %p192 = scmp.ne.s32.totalorder %s180, %s181
      %p193 = scmp.eq.s32.totalorder %s24, 1
      %p194 = por %p192, %p193
      %p196 = scmp.ne.s32.totalorder %s181, %s195
      %p197 = scmp.eq.s32.totalorder %s24, 0
      %p198 = por %p196, %p197
      %s200 = sadd.s32 %s199, 1
      %p203 = scmp.eq.s32.totalorder %s18, 1
      %p204 = scmp.ne.s32.totalorder %s199, %s201
      %p205 = scmp.eq.s32.totalorder %s18, 0
      %p206 = por %p204, %p205
      %p207 = scmp.ne.s32.totalorder %s199, %s201
      %p208 = scmp.eq.s32.totalorder %s23, 1
      %p209 = por %p207, %p208
      %p210 = scmp.ne.s32.totalorder %s201, %s202
      %p211 = scmp.eq.s32.totalorder %s23, 0
      %p212 = por %p210, %p211
      %p213 = scmp.ne.s32.totalorder %s201, %s202
      %p214 = scmp.eq.s32.totalorder %s24, 1
      %p215 = por %p213, %p214
      %p217 = scmp.ne.s32.totalorder %s202, %s216
      %p218 = scmp.eq.s32.totalorder %s24, 0
      %p219 = por %p217, %p218
      %s220 = ssub.s32 %s18, %s25
      %p221 = scmp.eq.s32.totalorder %s220, 0
      %s223 = sadd.s32 %s222, 1
      %s224 = scalar_select %p221, %s222, %s223
      %p227 = pneg %p221
      %p228 = scmp.eq.s32.totalorder %s18, 1
      %p229 = por %p227, %p228
      %p230 = scmp.ne.s32.totalorder %s222, %s225
      %p231 = scmp.eq.s32.totalorder %s18, 0
      %p232 = por %p230, %p231
      %p233 = scmp.ne.s32.totalorder %s222, %s225
      %p234 = scmp.eq.s32.totalorder %s23, 1
      %p235 = por %p233, %p234
      %p236 = scmp.ne.s32.totalorder %s225, %s226
      %p237 = scmp.eq.s32.totalorder %s23, 0
      %p238 = por %p236, %p237
      %p239 = scmp.ne.s32.totalorder %s225, %s226
      %p240 = scmp.eq.s32.totalorder %s24, 1
      %p241 = por %p239, %p240
      %p243 = scmp.ne.s32.totalorder %s226, %s242
      %p244 = scmp.eq.s32.totalorder %s24, 0
      %p245 = por %p243, %p244
      %p246 = scmp.le.s32.totalorder 1, %s18
      %p247 = scmp.lt.s32.totalorder %s18, 3
      %p248 = pnand %p246, %p247
      %p249 = pneg %p248
      // Predicated region
      $region9: #{encoder_decoder_forward.1} parent=5 // pred_check
        _
      $region10: #{encoder_decoder_forward.1} parent=5 // pred_check_branch
        %251 = sbr.rel (%p248) target = $region12
      $region11: #{encoder_decoder_forward.1} parent=5 // pred_region
        %s252 = ssub.s32 %s18, 1
        // Predicated region
        $region13: #{encoder_decoder_forward.1} parent=11 // pred_check
          %p253 = pneg %p65
        $region14: #{encoder_decoder_forward.1} parent=11 // pred_check_branch
          %255 = sbr.rel (%p253) target = $region16
        $region15: #{encoder_decoder_forward.1} parent=11 // pred_region
          _
        $region16: #{encoder_decoder_forward.1} parent=11 // pred_fallthru
          _
        // Predicated region
        $region17: #{encoder_decoder_forward.1} parent=11 // pred_check
          %p256 = pneg %p86
        $region18: #{encoder_decoder_forward.1} parent=11 // pred_check_branch
          %258 = sbr.rel (%p256) target = $region20
        $region19: #{encoder_decoder_forward.1} parent=11 // pred_region
          _
        $region20: #{encoder_decoder_forward.1} parent=11 // pred_fallthru
          _
        // Predicated region
        $region21: #{encoder_decoder_forward.1} parent=11 // pred_check
          %p259 = pneg %p107
        $region22: #{encoder_decoder_forward.1} parent=11 // pred_check_branch
          %261 = sbr.rel (%p259) target = $region24
        $region23: #{encoder_decoder_forward.1} parent=11 // pred_region
          _
        $region24: #{encoder_decoder_forward.1} parent=11 // pred_fallthru
          _
        // Predicated region
        $region25: #{encoder_decoder_forward.1} parent=11 // pred_check
          %p262 = pneg %p128
        $region26: #{encoder_decoder_forward.1} parent=11 // pred_check_branch
          %264 = sbr.rel (%p262) target = $region28
        $region27: #{encoder_decoder_forward.1} parent=11 // pred_region
          _
        $region28: #{encoder_decoder_forward.1} parent=11 // pred_fallthru
          _
        // Predicated region
        $region29: #{encoder_decoder_forward.1} parent=11 // pred_check
          %p265 = pneg %p149
        $region30: #{encoder_decoder_forward.1} parent=11 // pred_check_branch
          %267 = sbr.rel (%p265) target = $region32
        $region31: #{encoder_decoder_forward.1} parent=11 // pred_region
          _
        $region32: #{encoder_decoder_forward.1} parent=11 // pred_fallthru
          _
        // Predicated region
        $region33: #{encoder_decoder_forward.1} parent=11 // pred_check
          %p268 = pneg %p170
        $region34: #{encoder_decoder_forward.1} parent=11 // pred_check_branch
          %270 = sbr.rel (%p268) target = $region36
        $region35: #{encoder_decoder_forward.1} parent=11 // pred_region
          _
        $region36: #{encoder_decoder_forward.1} parent=11 // pred_fallthru
          _
        // Predicated region
        $region37: #{encoder_decoder_forward.1} parent=11 // pred_check
          %p271 = pneg %p191
        $region38: #{encoder_decoder_forward.1} parent=11 // pred_check_branch
          %273 = sbr.rel (%p271) target = $region40
        $region39: #{encoder_decoder_forward.1} parent=11 // pred_region
          _
        $region40: #{encoder_decoder_forward.1} parent=11 // pred_fallthru
          _
        // Predicated region
        $region41: #{encoder_decoder_forward.1} parent=11 // pred_check
          %p274 = pneg %p212
        $region42: #{encoder_decoder_forward.1} parent=11 // pred_check_branch
          %276 = sbr.rel (%p274) target = $region44
        $region43: #{encoder_decoder_forward.1} parent=11 // pred_region
          _
        $region44: #{encoder_decoder_forward.1} parent=11 // pred_fallthru
          _
      $region12: #{encoder_decoder_forward.1} parent=5 // pred_fallthru
        _
      %p277 = scmp.lt.s32.totalorder %s18, 2
      // Predicated region
      $region45: #{encoder_decoder_forward.1} parent=5 // pred_check
        %p278 = pneg %p277
      $region46: #{encoder_decoder_forward.1} parent=5 // pred_check_branch
        %280 = sbr.rel (%p278) target = $region48
      $region47: #{encoder_decoder_forward.1} parent=5 // pred_region
        // Predicated region
        $region49: #{encoder_decoder_forward.1} parent=47 // pred_check
          %p281 = pneg %p38
        $region50: #{encoder_decoder_forward.1} parent=47 // pred_check_branch
          %283 = sbr.rel (%p281) target = $region52
        $region51: #{encoder_decoder_forward.1} parent=47 // pred_region
          %p284 = scmp.lt.s32.totalorder %s18, 1
          %s285 = scalar_select %p284, %s18, 1
          %s286 = smul.addr %s285, 16
          %s287 = smul.addr %s286, 4
          %s288 = scalar_lea.vmem %s0, %s287
        $region52: #{encoder_decoder_forward.1} parent=47 // pred_fallthru
          _
      $region48: #{encoder_decoder_forward.1} parent=5 // pred_fallthru
        _
      %p289 = scmp.le.s32.totalorder 1, %s18
      %p290 = scmp.lt.s32.totalorder %s18, 3
      %p291 = pnand %p289, %p290
      %p292 = pneg %p291
      // Predicated region
      $region53: #{encoder_decoder_forward.1} parent=5 // pred_check
        _
      $region54: #{encoder_decoder_forward.1} parent=5 // pred_check_branch
        %294 = sbr.rel (%p291) target = $region56
      $region55: #{encoder_decoder_forward.1} parent=5 // pred_region
        %s295 = ssub.s32 %s18, 1
        %p296 = scmp.lt.s32.totalorder %s23, 1
        %s297 = scalar_select %p296, %s23, 1
        %s298 = smul.addr %s297, 16
        %s299 = smul.addr %s298, 4
        %s300 = scalar_lea.vmem %s0, %s299
        %p301 = pneg %p44
        %p302 = pneg %p41
        %p303 = pneg %p65
        %p304 = pneg %p62
        %p305 = pneg %p86
        %p306 = pneg %p83
        %p307 = pneg %p107
        %p308 = pneg %p104
        %p309 = pneg %p128
        %p310 = pneg %p125
        %p311 = pneg %p149
        %p312 = pneg %p146
        %p313 = pneg %p170
        %p314 = pneg %p167
        %p315 = pneg %p191
        %p316 = pneg %p188
        %p317 = pneg %p212
        %p318 = pneg %p209
        %p319 = pneg %p238
        %p320 = pneg %p235
        %s321 = sand.u32 %s225, 1
        %s322 = scalar_lea.sflag [#allocation3], %s321
        %s323 = sand.u32 %s225, 1
        %s324 = smul.addr %s323, 16
        %s325 = scalar_lea.vmem [#allocation2], %s324
        %p326 = scmp.lt.s32.totalorder %s23, 1
        %s327 = scalar_select %p326, %s23, 1
        %s328 = smul.addr %s327, 16
        %s329 = smul.addr %s328, 4
        %s330 = scalar_lea.vmem %s0, %s329
        %v332 = vld [vmem:[%s330] sm:$0xf]
        %v333 = vld [vmem:[%s330 + $0x4] sm:$0xf]
        %v334 = vld [vmem:[%s330 + $0x8] sm:$0xf]
        %v335 = vld [vmem:[%s330 + $0xc] sm:$0xf]
        %v336 = vld [vmem:[%s330 + $0x10] sm:$0xf]
        %v337 = vld [vmem:[%s330 + $0x14] sm:$0xf]
        %v338 = vld [vmem:[%s330 + $0x18] sm:$0xf]
        %v339 = vld [vmem:[%s330 + $0x1c] sm:$0xf]
        %v340 = vld [vmem:[%s330 + $0x20] sm:$0xf]
        %v341 = vld [vmem:[%s330 + $0x24] sm:$0xf]
        %v342 = vld [vmem:[%s330 + $0x28] sm:$0xf]
        %v343 = vld [vmem:[%s330 + $0x2c] sm:$0xf]
        %v344 = vld [vmem:[%s330 + $0x30] sm:$0xf]
        %v345 = vld [vmem:[%s330 + $0x34] sm:$0xf]
        %v346 = vld [vmem:[%s330 + $0x38] sm:$0xf]
        %v347 = vld [vmem:[%s330 + $0x3c] sm:$0xf]
        %v348 = vld [vmem:[%s1] sm:$0xf]
        %v349 = vld [vmem:[%s1 + $0x4] sm:$0xf]
        %v350 = vld [vmem:[%s1 + $0x8] sm:$0xf]
        %v351 = vld [vmem:[%s1 + $0xc] sm:$0xf]
        %v352 = vld [vmem:[%s1 + $0x10] sm:$0xf]
        %v353 = vld [vmem:[%s1 + $0x14] sm:$0xf]
        %v354 = vld [vmem:[%s1 + $0x18] sm:$0xf]
        %v355 = vld [vmem:[%s1 + $0x1c] sm:$0xf]
        %v356 = vld [vmem:[%s2] sm:$0xff]
        %v357 = vld [vmem:[%s2 + $0x8] sm:$0xff]
        %v358 = vld [vmem:[%s2 + $0x10] sm:$0xff]
        %v359 = vld [vmem:[%s2 + $0x18] sm:$0xff]
        %v360 = vld [vmem:[%s2 + $0x20] sm:$0xff]
        %v361 = vld [vmem:[%s2 + $0x28] sm:$0xff]
        %v362 = vld [vmem:[%s2 + $0x30] sm:$0xff]
        %v363 = vld [vmem:[%s2 + $0x38] sm:$0xff]
        %365 = vset.pattern.permute.xlu0 0
        %366 = vperm.xlu0 %365, %v356
        %v367 = vpop.permute.xlu0 %366
        %370 = vset.pattern.permute.xlu0 0
        %371 = vperm.xlu0 %370, %v357
        %v372 = vpop.permute.xlu0 %371
        %375 = vset.pattern.permute.xlu0 0
        %376 = vperm.xlu0 %375, %v358
        %v377 = vpop.permute.xlu0 %376
        %380 = vset.pattern.permute.xlu0 0
        %381 = vperm.xlu0 %380, %v359
        %v382 = vpop.permute.xlu0 %381
        %385 = vset.pattern.permute.xlu0 0
        %386 = vperm.xlu0 %385, %v360
        %v387 = vpop.permute.xlu0 %386
        %390 = vset.pattern.permute.xlu0 0
        %391 = vperm.xlu0 %390, %v361
        %v392 = vpop.permute.xlu0 %391
        %395 = vset.pattern.permute.xlu0 0
        %396 = vperm.xlu0 %395, %v362
        %v397 = vpop.permute.xlu0 %396
        %400 = vset.pattern.permute.xlu0 0
        %401 = vperm.xlu0 %400, %v363
        %v402 = vpop.permute.xlu0 %401
        %v412 = vunpack.c.l.b16 %v348
        %v413 = vunpack.c.l.b16 %v349
        %v414 = vunpack.c.l.b16 %v350
        %v415 = vunpack.c.l.b16 %v351
        %v416 = vunpack.c.l.b16 %v352
        %v417 = vunpack.c.l.b16 %v353
        %v418 = vunpack.c.l.b16 %v354
        %v419 = vunpack.c.l.b16 %v355
        %v420 = vpack.c.b16 %v413, %v412
        %v421 = vpack.c.b16 %v415, %v414
        %v422 = vpack.c.b16 %v417, %v416
        %v423 = vpack.c.b16 %v419, %v418
        %v444 = vunpack.c.l.b16 %v332
        %v445 = vunpack.c.l.b16 %v333
        %v446 = vunpack.c.l.b16 %v334
        %v447 = vunpack.c.l.b16 %v335
        %v448 = vunpack.c.l.b16 %v336
        %v449 = vunpack.c.l.b16 %v337
        %v450 = vunpack.c.l.b16 %v338
        %v451 = vunpack.c.l.b16 %v339
        %v452 = vunpack.c.l.b16 %v340
        %v453 = vunpack.c.l.b16 %v341
        %v454 = vunpack.c.l.b16 %v342
        %v455 = vunpack.c.l.b16 %v343
        %v456 = vunpack.c.l.b16 %v344
        %v457 = vunpack.c.l.b16 %v345
        %v458 = vunpack.c.l.b16 %v346
        %v459 = vunpack.c.l.b16 %v347
        %v460 = vpack.c.b16 %v445, %v444
        %v461 = vpack.c.b16 %v447, %v446
        %v462 = vpack.c.b16 %v449, %v448
        %v463 = vpack.c.b16 %v451, %v450
        %v464 = vpack.c.b16 %v453, %v452
        %v465 = vpack.c.b16 %v455, %v454
        %v466 = vpack.c.b16 %v457, %v456
        %v467 = vpack.c.b16 %v459, %v458
        %476 = vmatprep.subr.bf16.mxu0 0
        %477 = vmatpush1.bf16.msra.mxu0 %v467
        %478 = vmatprep.subr.bf16.mxu0 0
        %479 = vmatpush1.bf16.msra.mxu0 %v466
        %480 = vmatprep.subr.bf16.mxu0 0
        %481 = vmatpush1.bf16.msra.mxu0 %v465
        %482 = vmatprep.subr.bf16.mxu0 0
        %483 = vmatpush1.bf16.msra.mxu0 %v464
        %484 = vmatprep.subr.bf16.mxu0 0
        %485 = vmatpush1.bf16.msra.mxu0 %v463
        %486 = vmatprep.subr.bf16.mxu0 0
        %487 = vmatpush1.bf16.msra.mxu0 %v462
        %488 = vmatprep.subr.bf16.mxu0 0
        %489 = vmatpush1.bf16.msra.mxu0 %v461
        %490 = vmatprep.subr.bf16.mxu0 0
        %491 = vmatpush1.bf16.msra.mxu0 %v460
        %492 = vmatprep.subr.bf16.mxu0 0
        %493 = vmatpush2.bf16.msra.mxu0 0
        %494 = vmatprep.subr.bf16.mxu0 0
        %495 = vmatpush2.bf16.msra.mxu0 0
        %496 = vmatprep.subr.bf16.mxu0 0
        %497 = vmatpush2.bf16.msra.mxu0 0
        %498 = vmatprep.subr.bf16.mxu0 0
        %499 = vmatpush2.bf16.msra.mxu0 0
        %500 = vmatprep.subr.bf16.mxu0 0
        %501 = vmatpush2.bf16.msra.mxu0 0
        %502 = vmatprep.subr.bf16.mxu0 0
        %503 = vmatpush2.bf16.msra.mxu0 0
        %504 = vmatprep.subr.bf16.mxu0 0
        %505 = vmatpush2.bf16.msra.mxu0 0
        %506 = vmatprep.subr.bf16.mxu0 0
        %507 = vmatpush2.bf16.msra.mxu0 0
        %508 = vmatprep.mubr.bf16.mxu0 0
        %509 = vmatmul.mubr.bf16.gmra.mxu0 %v420
        %v510 = vpop.f32.mrf.mxu0
        %v511 = vadd.f32 %v367, %v510
        %v512 = vpop.f32.mrf.mxu0
        %v513 = vpop.f32.mrf.mxu0
        %v514 = vadd.f32 %v372, %v513
        %v515 = vpop.f32.mrf.mxu0
        %516 = vmatprep.mubr.bf16.mxu0 0
        %517 = vmatmul.mubr.bf16.gmra.mxu0 %v421
        %v518 = vpop.f32.mrf.mxu0
        %v519 = vadd.f32 %v377, %v518
        %v520 = vpop.f32.mrf.mxu0
        %v521 = vpop.f32.mrf.mxu0
        %v522 = vadd.f32 %v382, %v521
        %v523 = vpop.f32.mrf.mxu0
        %524 = vmatprep.mubr.bf16.mxu0 0
        %525 = vmatmul.mubr.bf16.gmra.mxu0 %v422
        %v526 = vpop.f32.mrf.mxu0
        %v527 = vadd.f32 %v387, %v526
        %v528 = vpop.f32.mrf.mxu0
        %v529 = vpop.f32.mrf.mxu0
        %v530 = vadd.f32 %v392, %v529
        %v531 = vpop.f32.mrf.mxu0
        %532 = vmatprep.mubr.bf16.mxu0 0
        %533 = vmatmul.mubr.bf16.gmra.mxu0 %v423
        %v534 = vpop.f32.mrf.mxu0
        %v535 = vadd.f32 %v397, %v534
        %v536 = vpop.f32.mrf.mxu0
        %v537 = vpop.f32.mrf.mxu0
        %v538 = vadd.f32 %v402, %v537
        %v539 = vpop.f32.mrf.mxu0
        %540 = vdwg.mxu0
        %v541 = vpack.c.bf16 %v514, %v511
        %v542 = vpack.c.bf16 %v522, %v519
        %v543 = vpack.c.bf16 %v530, %v527
        %v544 = vpack.c.bf16 %v538, %v535
        %v545 = vld [vmem:[%s3] sm:$0xf]
        %v546 = vld [vmem:[%s3 + $0x4] sm:$0xf]
        %v547 = vld [vmem:[%s3 + $0x8] sm:$0xf]
        %v548 = vld [vmem:[%s3 + $0xc] sm:$0xf]
        %v549 = vld [vmem:[%s3 + $0x10] sm:$0xf]
        %v550 = vld [vmem:[%s3 + $0x14] sm:$0xf]
        %v551 = vld [vmem:[%s3 + $0x18] sm:$0xf]
        %v552 = vld [vmem:[%s3 + $0x1c] sm:$0xf]
        %v553 = vld [vmem:[%s4] sm:$0xff]
        %v554 = vld [vmem:[%s4 + $0x8] sm:$0xff]
        %v555 = vld [vmem:[%s4 + $0x10] sm:$0xff]
        %v556 = vld [vmem:[%s4 + $0x18] sm:$0xff]
        %v557 = vld [vmem:[%s4 + $0x20] sm:$0xff]
        %v558 = vld [vmem:[%s4 + $0x28] sm:$0xff]
        %v559 = vld [vmem:[%s4 + $0x30] sm:$0xff]
        %v560 = vld [vmem:[%s4 + $0x38] sm:$0xff]
        %562 = vset.pattern.permute.xlu0 0
        %563 = vperm.xlu0 %562, %v553
        %v564 = vpop.permute.xlu0 %563
        %567 = vset.pattern.permute.xlu0 0
        %568 = vperm.xlu0 %567, %v554
        %v569 = vpop.permute.xlu0 %568
        %572 = vset.pattern.permute.xlu0 0
        %573 = vperm.xlu0 %572, %v555
        %v574 = vpop.permute.xlu0 %573
        %577 = vset.pattern.permute.xlu0 0
        %578 = vperm.xlu0 %577, %v556
        %v579 = vpop.permute.xlu0 %578
        %582 = vset.pattern.permute.xlu0 0
        %583 = vperm.xlu0 %582, %v557
        %v584 = vpop.permute.xlu0 %583
        %587 = vset.pattern.permute.xlu0 0
        %588 = vperm.xlu0 %587, %v558
        %v589 = vpop.permute.xlu0 %588
        %592 = vset.pattern.permute.xlu0 0
        %593 = vperm.xlu0 %592, %v559
        %v594 = vpop.permute.xlu0 %593
        %597 = vset.pattern.permute.xlu0 0
        %598 = vperm.xlu0 %597, %v560
        %v599 = vpop.permute.xlu0 %598
        %v609 = vunpack.c.l.b16 %v545
        %v610 = vunpack.c.l.b16 %v546
        %v611 = vunpack.c.l.b16 %v547
        %v612 = vunpack.c.l.b16 %v548
        %v613 = vunpack.c.l.b16 %v549
        %v614 = vunpack.c.l.b16 %v550
        %v615 = vunpack.c.l.b16 %v551
        %v616 = vunpack.c.l.b16 %v552
        %v617 = vpack.c.b16 %v610, %v609
        %v618 = vpack.c.b16 %v612, %v611
        %v619 = vpack.c.b16 %v614, %v613
        %v620 = vpack.c.b16 %v616, %v615
        %vm621 = vcmask 523264
        %v623 = vsel %vm621, %v617, 0
        %v626 = vsel %vm621, %v618, 0
        %v629 = vsel %vm621, %v619, 0
        %v632 = vsel %vm621, %v620, 0
        %634 = vmatprep.subr.bf16.mxu0 0
        %635 = vmatpush1.bf16.msra.mxu0 0
        %636 = vmatprep.subr.bf16.mxu0 0
        %637 = vmatpush1.bf16.msra.mxu0 0
        %638 = vmatprep.subr.bf16.mxu0 0
        %639 = vmatpush1.bf16.msra.mxu0 0
        %640 = vmatprep.subr.bf16.mxu0 0
        %641 = vmatpush1.bf16.msra.mxu0 0
        %642 = vmatprep.subr.bf16.mxu0 0
        %643 = vmatpush1.bf16.msra.mxu0 %v544
        %644 = vmatprep.subr.bf16.mxu0 0
        %645 = vmatpush1.bf16.msra.mxu0 %v543
        %646 = vmatprep.subr.bf16.mxu0 0
        %647 = vmatpush1.bf16.msra.mxu0 %v542
        %648 = vmatprep.subr.bf16.mxu0 0
        %649 = vmatpush1.bf16.msra.mxu0 %v541
        %650 = vmatprep.subr.bf16.mxu0 0
        %651 = vmatpush2.bf16.msra.mxu0 0
        %652 = vmatprep.subr.bf16.mxu0 0
        %653 = vmatpush2.bf16.msra.mxu0 0
        %654 = vmatprep.subr.bf16.mxu0 0
        %655 = vmatpush2.bf16.msra.mxu0 0
        %656 = vmatprep.subr.bf16.mxu0 0
        %657 = vmatpush2.bf16.msra.mxu0 0
        %658 = vmatprep.subr.bf16.mxu0 0
        %659 = vmatpush2.bf16.msra.mxu0 0
        %660 = vmatprep.subr.bf16.mxu0 0
        %661 = vmatpush2.bf16.msra.mxu0 0
        %662 = vmatprep.subr.bf16.mxu0 0
        %663 = vmatpush2.bf16.msra.mxu0 0
        %664 = vmatprep.subr.bf16.mxu0 0
        %665 = vmatpush2.bf16.msra.mxu0 0
        %666 = vmatprep.mubr.bf16.mxu0 0
        %667 = vmatmul.mubr.bf16.gmra.mxu0 %v623
        %v668 = vpop.f32.mrf.mxu0
        %v669 = vadd.f32 %v564, %v668
        %v670 = vpop.f32.mrf.mxu0
        %v671 = vpop.f32.mrf.mxu0
        %v672 = vadd.f32 %v569, %v671
        %v673 = vpop.f32.mrf.mxu0
        %674 = vmatprep.mubr.bf16.mxu0 0
        %675 = vmatmul.mubr.bf16.gmra.mxu0 %v626
        %v676 = vpop.f32.mrf.mxu0
        %v677 = vadd.f32 %v574, %v676
        %v678 = vpop.f32.mrf.mxu0
        %v679 = vpop.f32.mrf.mxu0
        %v680 = vadd.f32 %v579, %v679
        %v681 = vpop.f32.mrf.mxu0
        %682 = vmatprep.mubr.bf16.mxu0 0
        %683 = vmatmul.mubr.bf16.gmra.mxu0 %v629
        %v684 = vpop.f32.mrf.mxu0
        %v685 = vadd.f32 %v584, %v684
        %v686 = vpop.f32.mrf.mxu0
        %v687 = vpop.f32.mrf.mxu0
        %v688 = vadd.f32 %v589, %v687
        %v689 = vpop.f32.mrf.mxu0
        %690 = vmatprep.mubr.bf16.mxu0 0
        %691 = vmatmul.mubr.bf16.gmra.mxu0 %v632
        %v692 = vpop.f32.mrf.mxu0
        %v693 = vadd.f32 %v594, %v692
        %v694 = vpop.f32.mrf.mxu0
        %v695 = vpop.f32.mrf.mxu0
        %v696 = vadd.f32 %v599, %v695
        %v697 = vpop.f32.mrf.mxu0
        %698 = vdwg.mxu0
        %v699 = vpack.c.bf16 %v672, %v669
        %v700 = vpack.c.bf16 %v680, %v677
        %v701 = vpack.c.bf16 %v688, %v685
        %v702 = vpack.c.bf16 %v696, %v693
        %v703 = vld [vmem:[%s5] sm:$0xf]
        %v704 = vld [vmem:[%s5 + $0x4] sm:$0xf]
        %v705 = vld [vmem:[%s5 + $0x8] sm:$0xf]
        %v706 = vld [vmem:[%s5 + $0xc] sm:$0xf]
        %v707 = vld [vmem:[%s6] sm:$0xff]
        %v708 = vld [vmem:[%s6 + $0x8] sm:$0xff]
        %v709 = vld [vmem:[%s6 + $0x10] sm:$0xff]
        %v710 = vld [vmem:[%s6 + $0x18] sm:$0xff]
        %712 = vset.pattern.permute.xlu0 0
        %713 = vperm.xlu0 %712, %v707
        %v714 = vpop.permute.xlu0 %713
        %717 = vset.pattern.permute.xlu0 0
        %718 = vperm.xlu0 %717, %v708
        %v719 = vpop.permute.xlu0 %718
        %722 = vset.pattern.permute.xlu0 0
        %723 = vperm.xlu0 %722, %v709
        %v724 = vpop.permute.xlu0 %723
        %727 = vset.pattern.permute.xlu0 0
        %728 = vperm.xlu0 %727, %v710
        %v729 = vpop.permute.xlu0 %728
        %v735 = vunpack.c.l.b16 %v703
        %v736 = vunpack.c.l.b16 %v704
        %v737 = vunpack.c.l.b16 %v705
        %v738 = vunpack.c.l.b16 %v706
        %v739 = vpack.c.b16 %v736, %v735
        %v740 = vpack.c.b16 %v738, %v737
        %v742 = vsel %vm621, %v739, 0
        %v745 = vsel %vm621, %v740, 0
        %747 = vmatprep.subr.bf16.mxu0 0
        %748 = vmatpush1.bf16.msra.mxu0 0
        %749 = vmatprep.subr.bf16.mxu0 0
        %750 = vmatpush1.bf16.msra.mxu0 0
        %751 = vmatprep.subr.bf16.mxu0 0
        %752 = vmatpush1.bf16.msra.mxu0 0
        %753 = vmatprep.subr.bf16.mxu0 0
        %754 = vmatpush1.bf16.msra.mxu0 0
        %755 = vmatprep.subr.bf16.mxu0 0
        %756 = vmatpush1.bf16.msra.mxu0 %v702
        %757 = vmatprep.subr.bf16.mxu0 0
        %758 = vmatpush1.bf16.msra.mxu0 %v701
        %759 = vmatprep.subr.bf16.mxu0 0
        %760 = vmatpush1.bf16.msra.mxu0 %v700
        %761 = vmatprep.subr.bf16.mxu0 0
        %762 = vmatpush1.bf16.msra.mxu0 %v699
        %763 = vmatprep.subr.bf16.mxu0 0
        %764 = vmatpush2.bf16.msra.mxu0 0
        %765 = vmatprep.subr.bf16.mxu0 0
        %766 = vmatpush2.bf16.msra.mxu0 0
        %767 = vmatprep.subr.bf16.mxu0 0
        %768 = vmatpush2.bf16.msra.mxu0 0
        %769 = vmatprep.subr.bf16.mxu0 0
        %770 = vmatpush2.bf16.msra.mxu0 0
        %771 = vmatprep.subr.bf16.mxu0 0
        %772 = vmatpush2.bf16.msra.mxu0 0
        %773 = vmatprep.subr.bf16.mxu0 0
        %774 = vmatpush2.bf16.msra.mxu0 0
        %775 = vmatprep.subr.bf16.mxu0 0
        %776 = vmatpush2.bf16.msra.mxu0 0
        %777 = vmatprep.subr.bf16.mxu0 0
        %778 = vmatpush2.bf16.msra.mxu0 0
        %779 = vmatprep.mubr.bf16.mxu0 0
        %780 = vmatmul.mubr.bf16.gmra.mxu0 %v742
        %v781 = vpop.f32.mrf.mxu0
        %v782 = vadd.f32 %v714, %v781
        %v783 = vpop.f32.mrf.mxu0
        %v784 = vpop.f32.mrf.mxu0
        %v785 = vadd.f32 %v719, %v784
        %v786 = vpop.f32.mrf.mxu0
        %787 = vmatprep.mubr.bf16.mxu0 0
        %788 = vmatmul.mubr.bf16.gmra.mxu0 %v745
        %v789 = vpop.f32.mrf.mxu0
        %v790 = vadd.f32 %v724, %v789
        %v791 = vpop.f32.mrf.mxu0
        %v792 = vpop.f32.mrf.mxu0
        %v793 = vadd.f32 %v729, %v792
        %v794 = vpop.f32.mrf.mxu0
        %795 = vdwg.mxu0
        %v796 = vmax.f32 %v782, 0.0
        %v797 = vmax.f32 %v785, 0.0
        %v798 = vmax.f32 %v790, 0.0
        %v799 = vmax.f32 %v793, 0.0
        %v800 = vpack.c.bf16 %v797, %v796
        %v801 = vpack.c.bf16 %v799, %v798
        %v802 = vld [vmem:[%s7] sm:$0xf]
        %v803 = vld [vmem:[%s7 + $0x4] sm:$0xf]
        %v804 = vld [vmem:[%s8] sm:$0xff]
        %v805 = vld [vmem:[%s8 + $0x8] sm:$0xff]
        %807 = vset.pattern.permute.xlu0 0
        %808 = vperm.xlu0 %807, %v804
        %v809 = vpop.permute.xlu0 %808
        %812 = vset.pattern.permute.xlu0 0
        %813 = vperm.xlu0 %812, %v805
        %v814 = vpop.permute.xlu0 %813
        %v818 = vunpack.c.l.b16 %v802
        %v819 = vunpack.c.l.b16 %v803
        %v820 = vpack.c.b16 %v819, %v818
        %vm821 = vcmask 261120
        %v823 = vsel %vm821, %v820, 0
        %825 = vmatprep.subr.bf16.mxu0 0
        %826 = vmatpush1.bf16.msra.mxu0 0
        %827 = vmatprep.subr.bf16.mxu0 0
        %828 = vmatpush1.bf16.msra.mxu0 0
        %829 = vmatprep.subr.bf16.mxu0 0
        %830 = vmatpush1.bf16.msra.mxu0 0
        %831 = vmatprep.subr.bf16.mxu0 0
        %832 = vmatpush1.bf16.msra.mxu0 0
        %833 = vmatprep.subr.bf16.mxu0 0
        %834 = vmatpush1.bf16.msra.mxu0 0
        %835 = vmatprep.subr.bf16.mxu0 0
        %836 = vmatpush1.bf16.msra.mxu0 0
        %837 = vmatprep.subr.bf16.mxu0 0
        %838 = vmatpush1.bf16.msra.mxu0 %v801
        %839 = vmatprep.subr.bf16.mxu0 0
        %840 = vmatpush1.bf16.msra.mxu0 %v800
        %841 = vmatprep.subr.bf16.mxu0 0
        %842 = vmatpush2.bf16.msra.mxu0 0
        %843 = vmatprep.subr.bf16.mxu0 0
        %844 = vmatpush2.bf16.msra.mxu0 0
        %845 = vmatprep.subr.bf16.mxu0 0
        %846 = vmatpush2.bf16.msra.mxu0 0
        %847 = vmatprep.subr.bf16.mxu0 0
        %848 = vmatpush2.bf16.msra.mxu0 0
        %849 = vmatprep.subr.bf16.mxu0 0
        %850 = vmatpush2.bf16.msra.mxu0 0
        %851 = vmatprep.subr.bf16.mxu0 0
        %852 = vmatpush2.bf16.msra.mxu0 0
        %853 = vmatprep.subr.bf16.mxu0 0
        %854 = vmatpush2.bf16.msra.mxu0 0
        %855 = vmatprep.subr.bf16.mxu0 0
        %856 = vmatpush2.bf16.msra.mxu0 0
        %857 = vmatprep.mubr.bf16.mxu0 0
        %858 = vmatmul.mubr.bf16.gmra.mxu0 %v823
        %v859 = vpop.f32.mrf.mxu0
        %v860 = vadd.f32 %v809, %v859
        %v861 = vpop.f32.mrf.mxu0
        %v862 = vpop.f32.mrf.mxu0
        %v863 = vadd.f32 %v814, %v862
        %v864 = vpop.f32.mrf.mxu0
        %865 = vdwg.mxu0
        %vm866 = vcmask 195584
        %v867 = vsel %vm866, %v860, -inf
        %868 = vmax.xlane.f32.xlu0 %v867
        %v869 = vpop.xlane.xlu0 %868
        %v870 = vsel %vm866, %v863, -inf
        %871 = vmax.xlane.f32.xlu0 %v870
        %v872 = vpop.xlane.xlu0 %871
        %v873 = vsub.f32 %v860, %v869
        %v874 = vsub.f32 %v863, %v872
        %v875 = vmul.f32 %v873, 1.442695
        %v876 = vpow.pop %v875
        %v877 = vmul.f32 %v874, 1.442695
        %v878 = vpow.pop %v877
        %v879 = vsel %vm866, %v876, 0.0
        %880 = vadd.xlane.f32.xlu0 %v879
        %v881 = vpop.xlane.xlu0 %880
        %v882 = vsel %vm866, %v878, 0.0
        %883 = vadd.xlane.f32.xlu0 %v882
        %v884 = vpop.xlane.xlu0 %883
        %v885 = vlog2.pop %v881
        %v886 = vmul.f32 %v885, 0.6931472
        %v887 = vlog2.pop %v884
        %v888 = vmul.f32 %v887, 0.6931472
        %v889 = vsub.f32 %v873, %v886
        %v890 = vsub.f32 %v874, %v888
        %891 = vst.msk [vmem:[%s325] sm:$0xff] %vm866, %v889
        %892 = vst.msk [vmem:[%s325 + $0x8] sm:$0xff] %vm866, %v890
        %s893 = sand.u32 %s225, 1
        %s894 = scalar_lea.sflag [#allocation3], %s893
        %s895 = sand.u32 %s225, 1
        %s896 = smul.addr %s895, 16
        %s897 = scalar_lea.vmem [#allocation2], %s896
        // Predicated region
        $region57: #{encoder_decoder_forward.1} parent=55 // pred_check
          %p898 = pneg %p235
        $region58: #{encoder_decoder_forward.1} parent=55 // pred_check_branch
          %900 = sbr.rel (%p898) target = $region60
        $region59: #{encoder_decoder_forward.1} parent=55 // pred_region
          %s902 = ssub.s32 256, 256
          %903 = vsyncadd %s894, %s902
          %s904 = smul.addr %s23, 2
          %s905 = smul.addr %s904, 128
          %s906 = scalar_lea.hbm %s9, %s905
          %s907 = sshll.u32 %s897, 4
          %s908 = int_to_ptr.vmem [resolvable:$true] %s907
          %913 = dma.vmem_to_hbm [thread:$0]  %s908, 256, %s906, %s894, 128, 128, 8
        $region60: #{encoder_decoder_forward.1} parent=55 // pred_fallthru
          _
      $region56: #{encoder_decoder_forward.1} parent=5 // pred_fallthru
        _
      %p914 = scmp.le.s32.totalorder 2, %s18
      // Predicated region
      $region61: #{encoder_decoder_forward.1} parent=5 // pred_check
        %p915 = pneg %p914
      $region62: #{encoder_decoder_forward.1} parent=5 // pred_check_branch
        %917 = sbr.rel (%p915) target = $region64
      $region63: #{encoder_decoder_forward.1} parent=5 // pred_region
        %s918 = ssub.s32 %s18, 2
        // Predicated region
        $region65: #{encoder_decoder_forward.1} parent=63 // pred_check
          %p919 = pneg %p241
        $region66: #{encoder_decoder_forward.1} parent=63 // pred_check_branch
          %921 = sbr.rel (%p919) target = $region68
        $region67: #{encoder_decoder_forward.1} parent=63 // pred_region
          %s922 = sand.u32 %s226, 1
          %s923 = scalar_lea.sflag [#allocation3], %s922
          %s924 = sand.u32 %s226, 1
          %s925 = smul.addr %s924, 16
          %s926 = scalar_lea.vmem [#allocation2], %s925
          %927 = dma.done %s923, 256
        $region68: #{encoder_decoder_forward.1} parent=63 // pred_fallthru
          _
      $region64: #{encoder_decoder_forward.1} parent=5 // pred_fallthru
        _
    $region6: #{encoder_decoder_forward.1} parent=1 // loop_footer
      %s22 = sadd.s32 1, %s18
    $region7: #{encoder_decoder_forward.1} parent=1 // loop_footer_branch
      %17 = sbr.rel target = $region3
    $region8: #{encoder_decoder_forward.1} parent=1 // loop_exit
      _
    %928 = vsyncpa [#allocation3], 1
    %s929 = scalar_lea.sflag [#allocation3], 1
    %930 = vsyncpa %s929, 1

</llo_original>
